<compile_context>
chip_gen: v6e
topology: v6e:2x2x1
jax: 0.10.0
libtpu: 0.0.40
codegen_flags: <defaults>
</compile_context>

<pallas_src>
import math

import jax
import jax.numpy as jnp
from jax.experimental import pallas as pl
from jax.experimental.pallas import tpu as pltpu

_INV_SQRT2 = 1.0 / math.sqrt(2.0)


def _round_up(x, m):
    return ((x + m - 1) // m) * m


def _gelu_exact(h):
    # Exact GELU (matches torch.nn.GELU(approximate='none')), kept in f32.
    # TODO(synk): if GELU ever becomes the binding VALU slot (very narrow D+O), switch to the
    # tanh approximation so the transcendental moves to the EUP slot (numerics change).
    return 0.5 * h * (1.0 + jax.lax.erf(h * _INV_SQRT2))


def _mlp_kernel_direct(x_ref, w1_ref, b1_ref, w2_ref, b2_ref, o_ref):
    """f32 output: accumulate fc2 partials directly into the resident output block."""
    k = pl.program_id(1)

    @pl.when(k == 0)
    def _():
        o_ref[...] = jnp.broadcast_to(b2_ref[...], o_ref.shape)

    h = jnp.dot(x_ref[...], w1_ref[...], preferred_element_type=jnp.float32)
    h = _gelu_exact(h + b1_ref[...])
    # dropout p=0.0 -> identity (module default).
    o_ref[...] += jnp.dot(h.astype(w2_ref.dtype), w2_ref[...],
                          preferred_element_type=jnp.float32)


def _mlp_kernel_acc(x_ref, w1_ref, b1_ref, w2_ref, b2_ref, o_ref, acc_ref):
    """Non-f32 output: accumulate in an f32 VMEM scratch, cast on the last hidden step."""
    k = pl.program_id(1)

    @pl.when(k == 0)
    def _():
        acc_ref[...] = jnp.broadcast_to(b2_ref[...], acc_ref.shape)

    h = jnp.dot(x_ref[...], w1_ref[...], preferred_element_type=jnp.float32)
    h = _gelu_exact(h + b1_ref[...])
    acc_ref[...] += jnp.dot(h.astype(w2_ref.dtype), w2_ref[...],
                            preferred_element_type=jnp.float32)

    @pl.when(k == pl.num_programs(1) - 1)
    def _():
        o_ref[...] = acc_ref[...].astype(o_ref.dtype)


def _device_vmem_budget():
    """Per-core VMEM budget with ~8 MiB headroom; conservative fallback if unqueriable."""
    try:
        cap = int(pltpu.get_tpu_info().vmem_capacity_bytes)
    except Exception:
        cap = 64 * 2 ** 20  # v7x per-TensorCore capacity (smallest current generation)
    return max(16 * 2 ** 20, cap - 8 * 2 ** 20)


def prepare_mlp_params(w1, b1, w2, b2, *, compute_dtype=jnp.bfloat16, th=512,
                       single_k=None, tm_hint=512, vmem_budget=None):
    """One-time parameter prep: lane-dense 128 padding + cast weights to the compute dtype.

    w1: (D, H) == torch fc1.weight.T, b1: (H,), w2: (H, O) == torch fc2.weight.T, b2: (O,).
    """
    D, H = w1.shape
    H2, O = w2.shape
    assert H2 == H and b1.shape == (H,) and b2.shape == (O,)

    D_p = _round_up(D, 128)
    H_p = _round_up(H, 128)
    O_p = _round_up(O, 128)
    if vmem_budget is None:
        vmem_budget = _device_vmem_budget()
    cs = jnp.dtype(compute_dtype).itemsize

    # Single hidden tile (weights resident in VMEM, streamed from HBM once per call) whenever
    # the single-buffered weight slabs + double-buffered x/out tiles (+ acc) fit the budget.
    resident = (D_p * H_p * cs + H_p * O_p * cs + (H_p + O_p) * 4
                + 2 * tm_hint * D_p * cs + 2 * tm_hint * O_p * 4 + tm_hint * O_p * 4)
    if single_k is None:
        single_k = resident <= vmem_budget
    if single_k:
        th_e = H_p
    else:
        th_e = min(_round_up(th, 128), H_p)
        H_p = _round_up(H_p, th_e)

    def _prep(a, pads, dtype):
        if any(hi for _, hi in pads):
            a = jnp.pad(a, pads)  # zero padding is exact (padded hidden cols give GELU(0)=0)
        return a.astype(dtype)

    return dict(
        w1=_prep(w1, ((0, D_p - D), (0, H_p - H)), compute_dtype),
        b1=_prep(b1.reshape(1, H), ((0, 0), (0, H_p - H)), jnp.float32),
        w2=_prep(w2, ((0, H_p - H), (0, O_p - O)), compute_dtype),
        b2=_prep(b2.reshape(1, O), ((0, 0), (0, O_p - O)), jnp.float32),
        D=D, H=H, O=O, D_p=D_p, H_p=H_p, O_p=O_p, th=th_e,
        single_k=bool(single_k), compute_dtype=jnp.dtype(compute_dtype),
        vmem_budget=int(vmem_budget),
    )


def mlp_pallas(x, params, *, tm=512, out_dtype=None):
    """Apply the MLP to x of shape (..., D) using one-time-prepared params."""
    orig_shape = x.shape
    D, O = params["D"], params["O"]
    assert orig_shape[-1] == D
    x2 = x.reshape(-1, D)
    M = x2.shape[0]

    out_dtype = jnp.dtype(x.dtype if out_dtype is None else out_dtype)
    direct = out_dtype == jnp.dtype(jnp.float32)
    cdt = params["compute_dtype"]
    cs, osz = cdt.itemsize, out_dtype.itemsize
    D_p, H_p, O_p, th_e = params["D_p"], params["H_p"], params["O_p"], params["th"]
    single_k = params["single_k"]
    budget = params["vmem_budget"]
    wbuf = 1 if single_k else 2

    # Row tile: default 512 (MXU-friendly multiple of 256), rounded to 16 (bf16 sublanes).
    tm_e = min(_round_up(tm, 16), _round_up(M, 16))
    # Megacore guard: keep >=2 row tiles so the "parallel" axis feeds both v7x TensorCores
    # (only when weights are resident, or when halving keeps tm >= 256 to avoid re-streaming).
    if M > 16 and -(-M // tm_e) == 1:
        half = _round_up(-(-M // 2), 16)
        if single_k or half >= 256:
            tm_e = min(tm_e, half)

    def footprint(t):
        f = 2 * t * D_p * cs                                             # x tile (2 bufs)
        f += wbuf * (D_p * th_e * cs + th_e * 4 + th_e * O_p * cs) + 2 * O_p * 4
        f += 2 * t * O_p * osz                                           # out tile (2 bufs)
        if not direct:
            f += t * O_p * 4                                             # f32 acc scratch
        return f

    # Shrink the row tile if the footprint would exceed the device budget (v7x: 64 MiB/TC).
    while tm_e > 16 and footprint(tm_e) > budget:
        tm_e = max(16, _round_up(tm_e // 2, 16))

    M_p = _round_up(M, tm_e)
    grid = (M_p // tm_e, H_p // th_e)
    vmem_limit = int(min(budget, max(32 * 2 ** 20, 2 * footprint(tm_e))))

    if (M_p, D_p) == (M, D) and x2.dtype == cdt:
        x_p = x2
    else:
        x_p = jnp.pad(x2, ((0, M_p - M), (0, D_p - D))).astype(cdt)

    cost = pl.CostEstimate(
        flops=int(2 * M_p * H_p * (D_p + O_p)),
        transcendentals=int(M_p * H_p),
        bytes_accessed=int(M_p * D_p * cs + D_p * H_p * cs + H_p * O_p * cs
                           + (H_p + O_p) * 4 + M_p * O_p * osz),
    )

    kernel = _mlp_kernel_direct if direct else _mlp_kernel_acc
    scratch = [] if direct else [pltpu.VMEM((tm_e, O_p), jnp.float32)]

    def _run(resident_single_buffer):
        # Grid-invariant weight slabs are fetched once; Buffered(1) halves their VMEM use.
        wkw = {"pipeline_mode": pl.Buffered(1)} if resident_single_buffer else {}
        grid_spec = pltpu.PrefetchScalarGridSpec(
            num_scalar_prefetch=0,
            grid=grid,
            in_specs=[
                pl.BlockSpec((tm_e, D_p), lambda i, k: (i, 0)),          # x row tile
                pl.BlockSpec((D_p, th_e), lambda i, k: (0, k), **wkw),   # w1 hidden slab
                pl.BlockSpec((1, th_e), lambda i, k: (0, k), **wkw),     # b1 (f32)
                pl.BlockSpec((th_e, O_p), lambda i, k: (k, 0), **wkw),   # w2 hidden slab
                pl.BlockSpec((1, O_p), lambda i, k: (0, 0), **wkw),      # b2 (f32)
            ],
            out_specs=pl.BlockSpec((tm_e, O_p), lambda i, k: (i, 0)),    # resident across k
            scratch_shapes=scratch,
        )
        return pl.pallas_call(
            kernel,
            out_shape=jax.ShapeDtypeStruct((M_p, O_p), out_dtype),
            grid_spec=grid_spec,
            compiler_params=pltpu.CompilerParams(
                dimension_semantics=("parallel", "arbitrary"),
                vmem_limit_bytes=vmem_limit,
            ),
            cost_estimate=cost,
        )(x_p, params["w1"], params["b1"], params["w2"], params["b2"])

    if single_k:
        try:
            out_p = _run(True)
        except Exception:
            # Defensive fallback for jax versions without BlockSpec pipeline_mode / Buffered(1).
            out_p = _run(False)
    else:
        out_p = _run(False)

    if (M_p, O_p) != (M, O):
        out_p = out_p[:M, :O]
    return out_p.reshape(*orig_shape[:-1], O)


def mlp_reference(x, w1, b1, w2, b2, compute_dtype=None):
    """Pure-JAX reference. compute_dtype=None -> full f32; else emulate the kernel's casts."""
    if compute_dtype is not None:
        xc, w1c, w2c = x.astype(compute_dtype), w1.astype(compute_dtype), w2.astype(compute_dtype)
    else:
        xc, w1c, w2c = x, w1, w2
    h = jnp.dot(xc, w1c, preferred_element_type=jnp.float32) + b1
    h = _gelu_exact(h)
    if compute_dtype is not None:
        h = h.astype(compute_dtype)
    return jnp.dot(h, w2c, preferred_element_type=jnp.float32) + b2


def _make_params(key, D, H, O):
    k1, kb1, k2, kb2 = jax.random.split(key, 4)
    lim1, lim2 = 1.0 / math.sqrt(D), 1.0 / math.sqrt(H)
    w1 = jax.random.uniform(k1, (D, H), jnp.float32, -lim1, lim1)
    b1 = jax.random.uniform(kb1, (H,), jnp.float32, -lim1, lim1)
    w2 = jax.random.uniform(k2, (H, O), jnp.float32, -lim2, lim2)
    b2 = jax.random.uniform(kb2, (O,), jnp.float32, -lim2, lim2)
    return w1, b1, w2, b2


if __name__ == "__main__":
    key = jax.random.PRNGKey(0)

    # --- Test 1: small ViT-like shapes (batch=2, seq=8, in=32, hidden=64, out=32) ---
    B, S, D, H = 2, 8, 32, 64
    O = D
    kx, kp = jax.random.split(key)
    x = jax.random.normal(kx, (B, S, D), dtype=jnp.float32)
    w1, b1, w2, b2 = _make_params(kp, D, H, O)
    params = prepare_mlp_params(w1, b1, w2, b2)

    out = mlp_pallas(x, params)
    jax.block_until_ready(out)

    x2d = x.reshape(B * S, D)
    ref_bf16 = mlp_reference(x2d, w1, b1, w2, b2, compute_dtype=jnp.bfloat16).reshape(B, S, O)
    ref_f32 = mlp_reference(x2d, w1, b1, w2, b2).reshape(B, S, O)
    assert out.shape == (B, S, O) and out.dtype == x.dtype
    assert jnp.allclose(out, ref_bf16, atol=1e-2, rtol=1e-2), "mismatch vs bf16-emulated reference"
    assert jnp.allclose(out, ref_f32, atol=3e-2, rtol=3e-2), "mismatch vs f32 reference"

    # --- Test 1b: bf16 output path (exercises the scratch-accumulator kernel variant) ---
    out_bf16 = mlp_pallas(x, params, out_dtype=jnp.bfloat16)
    jax.block_until_ready(out_bf16)
    assert jnp.allclose(out_bf16.astype(jnp.float32), ref_bf16, atol=2e-2, rtol=2e-2), \
        "mismatch (bf16 output)"

    # --- Test 2: resident-weight single-k path, 2 row tiles (megacore i-axis) ---
    M2, D2, H2, O2 = 512, 256, 1024, 256
    kx2, kp2 = jax.random.split(jax.random.PRNGKey(1))
    x2 = jax.random.normal(kx2, (M2, D2), dtype=jnp.float32)
    w1b, b1b, w2b, b2b = _make_params(kp2, D2, H2, O2)
    params2 = prepare_mlp_params(w1b, b1b, w2b, b2b)

    out2 = mlp_pallas(x2, params2)
    jax.block_until_ready(out2)

    ref2_bf16 = mlp_reference(x2, w1b, b1b, w2b, b2b, compute_dtype=jnp.bfloat16)
    ref2_f32 = mlp_reference(x2, w1b, b1b, w2b, b2b)
    assert jnp.allclose(out2, ref2_bf16, atol=1e-2, rtol=1e-2), "mismatch vs bf16 ref (resident)"
    assert jnp.allclose(out2, ref2_f32, atol=5e-2, rtol=5e-2), "mismatch vs f32 ref (resident)"

    # --- Test 3: forced multi-k hidden tiling (grid (2, 4)) -> accumulation across k ---
    params3 = prepare_mlp_params(w1b, b1b, w2b, b2b, th=256, single_k=False)
    out3 = mlp_pallas(x2, params3)
    jax.block_until_ready(out3)
    assert jnp.allclose(out3, ref2_bf16, atol=1e-2, rtol=1e-2), "mismatch vs bf16 ref (tiled k)"
    assert jnp.allclose(out3, ref2_f32, atol=5e-2, rtol=5e-2), "mismatch vs f32 ref (tiled k)"

    # TODO(synk): dropout with p>0 (training mode) would need pltpu.prng_* masking;
    # the module default drop=0.0, so it is an identity here.
    print("KERNEL_OK")
</pallas_src>

<mosaic_0001>
module attributes {stable_mosaic.version = 11 : i64} {
  func.func @_mlp_kernel_direct(%arg0: i32, %arg1: i32, %arg2: memref<16x128xbf16, #tpu.memory_space<vmem>>, %arg3: memref<128x128xbf16, #tpu.memory_space<vmem>>, %arg4: memref<1x128xf32, #tpu.memory_space<vmem>>, %arg5: memref<128x128xbf16, #tpu.memory_space<vmem>>, %arg6: memref<1x128xf32, #tpu.memory_space<vmem>>, %arg7: memref<16x128xf32, #tpu.memory_space<vmem>>) attributes {dimension_semantics = [#tpu.dimension_semantics<parallel>, #tpu.dimension_semantics<arbitrary>], iteration_bounds = array<i64: 1, 1>, scalar_prefetch = 0 : i64, scratch_operands = 0 : i64, tpu.core_type = #tpu.core_type<tc>, window_params = [{transform_indices = @transform_0, window_bounds = array<i64: 16, 128>}, {pipeline_mode = #tpu.pipeline_mode<synchronous>, transform_indices = @transform_1, window_bounds = array<i64: 128, 128>}, {pipeline_mode = #tpu.pipeline_mode<synchronous>, transform_indices = @transform_2, window_bounds = array<i64: 1, 128>}, {pipeline_mode = #tpu.pipeline_mode<synchronous>, transform_indices = @transform_3, window_bounds = array<i64: 128, 128>}, {pipeline_mode = #tpu.pipeline_mode<synchronous>, transform_indices = @transform_4, window_bounds = array<i64: 1, 128>}, {transform_indices = @transform_5, window_bounds = array<i64: 16, 128>}]} {
    %c0_i32 = arith.constant 0 : i32
    %0 = arith.cmpi eq, %arg1, %c0_i32 : i32
    %1 = arith.extui %0 : i1 to i32
    %c0_i32_0 = arith.constant 0 : i32
    %2 = arith.cmpi ne, %1, %c0_i32_0 : i32
    scf.if %2 {
      %c0_16 = arith.constant 0 : index
      %c0_17 = arith.constant 0 : index
      %23 = vector.load %arg6[%c0_16, %c0_17] : memref<1x128xf32, #tpu.memory_space<vmem>>, vector<1x128xf32>
      %24 = vector.shape_cast %23 : vector<1x128xf32> to vector<1x128xf32>
      %25 = vector.broadcast %24 : vector<1x128xf32> to vector<16x128xf32>
      %c0_18 = arith.constant 0 : index
      %c0_19 = arith.constant 0 : index
      %26 = vector.load %arg7[%c0_18, %c0_19] : memref<16x128xf32, #tpu.memory_space<vmem>>, vector<16x128xf32>
      tpu.vector_store %arg7[%c0_18, %c0_19], %25 {strides = array<i32>} : memref<16x128xf32, #tpu.memory_space<vmem>>, vector<16x128xf32>,
    } else {
    }
    %c0 = arith.constant 0 : index
    %c0_1 = arith.constant 0 : index
    %3 = vector.load %arg2[%c0, %c0_1] : memref<16x128xbf16, #tpu.memory_space<vmem>>, vector<16x128xbf16>
    %c0_2 = arith.constant 0 : index
    %c0_3 = arith.constant 0 : index
    %4 = vector.load %arg3[%c0_2, %c0_3] : memref<128x128xbf16, #tpu.memory_space<vmem>>, vector<128x128xbf16>
    %cst = arith.constant dense<0.000000e+00> : vector<16x128xf32>
    %5 = tpu.matmul %3, %4, %cst {dimension_numbers = #tpu.dot_dimension_numbers<[1], [0], [0], [1], [0, 0, 1, 1], [], []>} : vector<16x128xbf16>, vector<128x128xbf16>, vector<16x128xf32> -> vector<16x128xf32>
    %c0_4 = arith.constant 0 : index
    %c0_5 = arith.constant 0 : index
    %6 = vector.load %arg4[%c0_4, %c0_5] : memref<1x128xf32, #tpu.memory_space<vmem>>, vector<1x128xf32>
    %7 = vector.broadcast %6 : vector<1x128xf32> to vector<16x128xf32>
    %8 = arith.addf %5, %7 : vector<16x128xf32>
    %cst_6 = arith.constant 5.000000e-01 : f32
    %9 = vector.broadcast %cst_6 : f32 to vector<16x128xf32>
    %10 = arith.mulf %9, %8 : vector<16x128xf32>
    %cst_7 = arith.constant 0.707106769 : f32
    %11 = vector.broadcast %cst_7 : f32 to vector<16x128xf32>
    %12 = arith.mulf %8, %11 : vector<16x128xf32>
    %13 = math.erf %12 : vector<16x128xf32>
    %cst_8 = arith.constant 1.000000e+00 : f32
    %14 = vector.broadcast %cst_8 : f32 to vector<16x128xf32>
    %15 = arith.addf %14, %13 : vector<16x128xf32>
    %16 = arith.mulf %10, %15 : vector<16x128xf32>
    %c0_9 = arith.constant 0 : index
    %c0_10 = arith.constant 0 : index
    %17 = vector.load %arg7[%c0_9, %c0_10] : memref<16x128xf32, #tpu.memory_space<vmem>>, vector<16x128xf32>
    %18 = arith.truncf %16 : vector<16x128xf32> to vector<16x128xbf16>
    %c0_11 = arith.constant 0 : index
    %c0_12 = arith.constant 0 : index
    %19 = vector.load %arg5[%c0_11, %c0_12] : memref<128x128xbf16, #tpu.memory_space<vmem>>, vector<128x128xbf16>
    %cst_13 = arith.constant dense<0.000000e+00> : vector<16x128xf32>
    %20 = tpu.matmul %18, %19, %cst_13 {dimension_numbers = #tpu.dot_dimension_numbers<[1], [0], [0], [1], [0, 0, 1, 1], [], []>} : vector<16x128xbf16>, vector<128x128xbf16>, vector<16x128xf32> -> vector<16x128xf32>
    %21 = arith.addf %17, %20 : vector<16x128xf32>
    %c0_14 = arith.constant 0 : index
    %c0_15 = arith.constant 0 : index
    %22 = vector.load %arg7[%c0_14, %c0_15] : memref<16x128xf32, #tpu.memory_space<vmem>>, vector<16x128xf32>
    tpu.vector_store %arg7[%c0_14, %c0_15], %21 {strides = array<i32>} : memref<16x128xf32, #tpu.memory_space<vmem>>, vector<16x128xf32>,
    return
  }
  func.func @transform_0(%arg0: i32, %arg1: i32) -> (i32, i32) {
    %c0_i32 = arith.constant 0 : i32
    %c0_i32_0 = arith.constant 0 : i32
    return %arg0, %c0_i32 : i32, i32
  }
  func.func @transform_1(%arg0: i32, %arg1: i32) -> (i32, i32) {
    %c0_i32 = arith.constant 0 : i32
    %c0_i32_0 = arith.constant 0 : i32
    return %c0_i32, %arg1 : i32, i32
  }
  func.func @transform_2(%arg0: i32, %arg1: i32) -> (i32, i32) {
    %c0_i32 = arith.constant 0 : i32
    %c0_i32_0 = arith.constant 0 : i32
    return %c0_i32, %arg1 : i32, i32
  }
  func.func @transform_3(%arg0: i32, %arg1: i32) -> (i32, i32) {
    %c0_i32 = arith.constant 0 : i32
    %c0_i32_0 = arith.constant 0 : i32
    return %arg1, %c0_i32 : i32, i32
  }
  func.func @transform_4(%arg0: i32, %arg1: i32) -> (i32, i32) {
    %c0_i32 = arith.constant 0 : i32
    %c0_i32_0 = arith.constant 0 : i32
    %c0_i32_1 = arith.constant 0 : i32
    return %c0_i32, %c0_i32_0 : i32, i32
  }
  func.func @transform_5(%arg0: i32, %arg1: i32) -> (i32, i32) {
    %c0_i32 = arith.constant 0 : i32
    %c0_i32_0 = arith.constant 0 : i32
    return %arg0, %c0_i32 : i32, i32
  }
}

module attributes {stable_mosaic.version = 11 : i64} {
  func.func @_mlp_kernel_direct(%arg0: i32, %arg1: i32, %arg2: memref<16x128xbf16, #tpu.memory_space<vmem>>, %arg3: memref<128x128xbf16, #tpu.memory_space<vmem>>, %arg4: memref<1x128xf32, #tpu.memory_space<vmem>>, %arg5: memref<128x128xbf16, #tpu.memory_space<vmem>>, %arg6: memref<1x128xf32, #tpu.memory_space<vmem>>, %arg7: memref<16x128xf32, #tpu.memory_space<vmem>>) attributes {dimension_semantics = [#tpu.dimension_semantics<parallel>, #tpu.dimension_semantics<arbitrary>], iteration_bounds = array<i64: 1, 1>, scalar_prefetch = 0 : i64, scratch_operands = 0 : i64, tpu.core_type = #tpu.core_type<tc>, window_params = [{transform_indices = @transform_0, window_bounds = array<i64: 16, 128>}, {transform_indices = @transform_1, window_bounds = array<i64: 128, 128>}, {transform_indices = @transform_2, window_bounds = array<i64: 1, 128>}, {transform_indices = @transform_3, window_bounds = array<i64: 128, 128>}, {pipeline_mode = #tpu.pipeline_mode<synchronous>, transform_indices = @transform_4, window_bounds = array<i64: 1, 128>}, {transform_indices = @transform_5, window_bounds = array<i64: 16, 128>}]} {
    %c0_i32 = arith.constant 0 : i32
    %0 = arith.cmpi eq, %arg1, %c0_i32 : i32
    %1 = arith.extui %0 : i1 to i32
    %c0_i32_0 = arith.constant 0 : i32
    %2 = arith.cmpi ne, %1, %c0_i32_0 : i32
    scf.if %2 {
      %c0_16 = arith.constant 0 : index
      %c0_17 = arith.constant 0 : index
      %23 = vector.load %arg6[%c0_16, %c0_17] : memref<1x128xf32, #tpu.memory_space<vmem>>, vector<1x128xf32>
      %24 = vector.shape_cast %23 : vector<1x128xf32> to vector<1x128xf32>
      %25 = vector.broadcast %24 : vector<1x128xf32> to vector<16x128xf32>
      %c0_18 = arith.constant 0 : index
      %c0_19 = arith.constant 0 : index
      %26 = vector.load %arg7[%c0_18, %c0_19] : memref<16x128xf32, #tpu.memory_space<vmem>>, vector<16x128xf32>
      tpu.vector_store %arg7[%c0_18, %c0_19], %25 {strides = array<i32>} : memref<16x128xf32, #tpu.memory_space<vmem>>, vector<16x128xf32>,
    } else {
    }
    %c0 = arith.constant 0 : index
    %c0_1 = arith.constant 0 : index
    %3 = vector.load %arg2[%c0, %c0_1] : memref<16x128xbf16, #tpu.memory_space<vmem>>, vector<16x128xbf16>
    %c0_2 = arith.constant 0 : index
    %c0_3 = arith.constant 0 : index
    %4 = vector.load %arg3[%c0_2, %c0_3] : memref<128x128xbf16, #tpu.memory_space<vmem>>, vector<128x128xbf16>
    %cst = arith.constant dense<0.000000e+00> : vector<16x128xf32>
    %5 = tpu.matmul %3, %4, %cst {dimension_numbers = #tpu.dot_dimension_numbers<[1], [0], [0], [1], [0, 0, 1, 1], [], []>} : vector<16x128xbf16>, vector<128x128xbf16>, vector<16x128xf32> -> vector<16x128xf32>
    %c0_4 = arith.constant 0 : index
    %c0_5 = arith.constant 0 : index
    %6 = vector.load %arg4[%c0_4, %c0_5] : memref<1x128xf32, #tpu.memory_space<vmem>>, vector<1x128xf32>
    %7 = vector.broadcast %6 : vector<1x128xf32> to vector<16x128xf32>
    %8 = arith.addf %5, %7 : vector<16x128xf32>
    %cst_6 = arith.constant 5.000000e-01 : f32
    %9 = vector.broadcast %cst_6 : f32 to vector<16x128xf32>
    %10 = arith.mulf %9, %8 : vector<16x128xf32>
    %cst_7 = arith.constant 0.707106769 : f32
    %11 = vector.broadcast %cst_7 : f32 to vector<16x128xf32>
    %12 = arith.mulf %8, %11 : vector<16x128xf32>
    %13 = math.erf %12 : vector<16x128xf32>
    %cst_8 = arith.constant 1.000000e+00 : f32
    %14 = vector.broadcast %cst_8 : f32 to vector<16x128xf32>
    %15 = arith.addf %14, %13 : vector<16x128xf32>
    %16 = arith.mulf %10, %15 : vector<16x128xf32>
    %c0_9 = arith.constant 0 : index
    %c0_10 = arith.constant 0 : index
    %17 = vector.load %arg7[%c0_9, %c0_10] : memref<16x128xf32, #tpu.memory_space<vmem>>, vector<16x128xf32>
    %18 = arith.truncf %16 : vector<16x128xf32> to vector<16x128xbf16>
    %c0_11 = arith.constant 0 : index
    %c0_12 = arith.constant 0 : index
    %19 = vector.load %arg5[%c0_11, %c0_12] : memref<128x128xbf16, #tpu.memory_space<vmem>>, vector<128x128xbf16>
    %cst_13 = arith.constant dense<0.000000e+00> : vector<16x128xf32>
    %20 = tpu.matmul %18, %19, %cst_13 {dimension_numbers = #tpu.dot_dimension_numbers<[1], [0], [0], [1], [0, 0, 1, 1], [], []>} : vector<16x128xbf16>, vector<128x128xbf16>, vector<16x128xf32> -> vector<16x128xf32>
    %21 = arith.addf %17, %20 : vector<16x128xf32>
    %c0_14 = arith.constant 0 : index
    %c0_15 = arith.constant 0 : index
    %22 = vector.load %arg7[%c0_14, %c0_15] : memref<16x128xf32, #tpu.memory_space<vmem>>, vector<16x128xf32>
    tpu.vector_store %arg7[%c0_14, %c0_15], %21 {strides = array<i32>} : memref<16x128xf32, #tpu.memory_space<vmem>>, vector<16x128xf32>,
    return
  }
  func.func @transform_0(%arg0: i32, %arg1: i32) -> (i32, i32) {
    %c0_i32 = arith.constant 0 : i32
    %c0_i32_0 = arith.constant 0 : i32
    return %arg0, %c0_i32 : i32, i32
  }
  func.func @transform_1(%arg0: i32, %arg1: i32) -> (i32, i32) {
    %c0_i32 = arith.constant 0 : i32
    %c0_i32_0 = arith.constant 0 : i32
    return %c0_i32, %arg1 : i32, i32
  }
  func.func @transform_2(%arg0: i32, %arg1: i32) -> (i32, i32) {
    %c0_i32 = arith.constant 0 : i32
    %c0_i32_0 = arith.constant 0 : i32
    return %c0_i32, %arg1 : i32, i32
  }
  func.func @transform_3(%arg0: i32, %arg1: i32) -> (i32, i32) {
    %c0_i32 = arith.constant 0 : i32
    %c0_i32_0 = arith.constant 0 : i32
    return %arg1, %c0_i32 : i32, i32
  }
  func.func @transform_4(%arg0: i32, %arg1: i32) -> (i32, i32) {
    %c0_i32 = arith.constant 0 : i32
    %c0_i32_0 = arith.constant 0 : i32
    %c0_i32_1 = arith.constant 0 : i32
    return %c0_i32, %c0_i32_0 : i32, i32
  }
  func.func @transform_5(%arg0: i32, %arg1: i32) -> (i32, i32) {
    %c0_i32 = arith.constant 0 : i32
    %c0_i32_0 = arith.constant 0 : i32
    return %arg0, %c0_i32 : i32, i32
  }
}

</mosaic_0001>

<llo_original>
// kernel: tpu_custom_call.1
$region0: #{tpu_custom_call.1}
  #allocation0 [shape = 'u32[]', space=smem, size = 0x4, offset = 0x4, fixed_abs, tag = 'smem constant byte address 0x4 - core index']
  #allocation1 [shape = 'u32[144,128]{1,0:T(1,128)}', space=vmem, size = 0x12000, scoped, tag = 'internal scratch']
  %s0 = inlined_call_operand.hbm [shape: bf16[16,128], index: 0, kind: input, shape index: {}]
  %s1 = inlined_call_operand.hbm [shape: bf16[128,128], index: 1, kind: input, shape index: {}]
  %s2 = inlined_call_operand.vmem [shape: f32[1,128], index: 2, kind: input, shape index: {}]
  %s3 = inlined_call_operand.hbm [shape: bf16[128,128], index: 3, kind: input, shape index: {}]
  %s4 = inlined_call_operand.vmem [shape: f32[1,128], index: 4, kind: input, shape index: {}]
  %s5 = inlined_call_operand.hbm [shape: f32[16,128], index: 5, kind: output, shape index: {}]
  %s6 = sld [smem:[#allocation0]]
  $region46: #{tpu_custom_call.1} parent=0
    _
  %s8 = ssub.s32 1, %s6
  %s9 = scalar_select 0, %s8, %s6
  $region1: #{tpu_custom_call.1} parent=0
    #allocation2 [shape = 'u8[4096]{0}', space=vmem, size = 0x1000, scoped, tag = 'input window, operand 0, single buffered']
    #allocation3 [shape = 's32[1]{0}', space=sflag, size = 0x4, scoped, tag = 'scoped memory for tpu_custom_call.1']
    #allocation4 [shape = 's32[1]{0}', space=sflag, size = 0x4, scoped, tag = 'scoped memory for tpu_custom_call.1']
    #allocation5 [shape = 'u8[32768]{0}', space=vmem, size = 0x8000, scoped, tag = 'input window, operand 1, single buffered']
    #allocation6 [shape = 's32[1]{0}', space=sflag, size = 0x4, scoped, tag = 'scoped memory for tpu_custom_call.1']
    #allocation7 [shape = 'u8[32768]{0}', space=vmem, size = 0x8000, scoped, tag = 'input window, operand 3, single buffered']
    #allocation8 [shape = 'u8[8192]{0}', space=vmem, size = 0x2000, scoped, tag = 'output window, operand 0, single buffered']
    %10 = vsyncpa [#allocation3], 0
    %11 = vsyncpa [#allocation6], 0
    %12 = vsyncpa [#allocation4], 0
    // Predicated region
    $region2: #{tpu_custom_call.1} parent=1 // pred_check
      _
    $region3: #{tpu_custom_call.1} parent=1 // pred_check_branch
      %14 = sbr.rel (0) target = $region5
    $region4: #{tpu_custom_call.1} parent=1 // pred_region
      %s16 = ssub.s32 128, 128
      %17 = vsyncadd [#allocation3], %s16
      %s18 = sshll.u32 [#allocation2], 4
      %s19 = int_to_ptr.vmem [resolvable:$true] %s18
      %24 = dma.hbm_to_vmem [thread:$0]  %s0, 128, %s19, [#allocation3], 64, 64, 4
    $region5: #{tpu_custom_call.1} parent=1 // pred_fallthru
      _
    // Predicated region
    $region6: #{tpu_custom_call.1} parent=1 // pred_check
      _
    $region7: #{tpu_custom_call.1} parent=1 // pred_check_branch
      %26 = sbr.rel (0) target = $region9
    $region8: #{tpu_custom_call.1} parent=1 // pred_region
      %s28 = ssub.s32 1024, 1024
      %29 = vsyncadd [#allocation6], %s28
      %s30 = sshll.u32 [#allocation5], 4
      %s31 = int_to_ptr.vmem [resolvable:$true] %s30
      %36 = dma.hbm_to_vmem [thread:$0]  %s1, 1024, %s31, [#allocation6], 64, 64, 4
    $region9: #{tpu_custom_call.1} parent=1 // pred_fallthru
      _
    // Predicated region
    $region10: #{tpu_custom_call.1} parent=1 // pred_check
      _
    $region11: #{tpu_custom_call.1} parent=1 // pred_check_branch
      %38 = sbr.rel (0) target = $region13
    $region12: #{tpu_custom_call.1} parent=1 // pred_region
      _
    $region13: #{tpu_custom_call.1} parent=1 // pred_fallthru
      _
    // Predicated region
    $region14: #{tpu_custom_call.1} parent=1 // pred_check
      _
    $region15: #{tpu_custom_call.1} parent=1 // pred_check_branch
      %40 = sbr.rel (0) target = $region17
    $region16: #{tpu_custom_call.1} parent=1 // pred_region
      %s42 = ssub.s32 1024, 1024
      %43 = vsyncadd [#allocation6], %s42
      %s44 = sshll.u32 [#allocation7], 4
      %s45 = int_to_ptr.vmem [resolvable:$true] %s44
      %50 = dma.hbm_to_vmem [thread:$0]  %s3, 1024, %s45, [#allocation6], 64, 64, 4
    $region17: #{tpu_custom_call.1} parent=1 // pred_fallthru
      _
    // Predicated region
    $region18: #{tpu_custom_call.1} parent=1 // pred_check
      _
    $region19: #{tpu_custom_call.1} parent=1 // pred_check_branch
      %52 = sbr.rel (0) target = $region21
    $region20: #{tpu_custom_call.1} parent=1 // pred_region
      _
    $region21: #{tpu_custom_call.1} parent=1 // pred_fallthru
      _
    // Predicated region
    $region22: #{tpu_custom_call.1} parent=1 // pred_check
      _
    $region23: #{tpu_custom_call.1} parent=1 // pred_check_branch
      %54 = sbr.rel (0) target = $region25
    $region24: #{tpu_custom_call.1} parent=1 // pred_region
      %55 = dma.done [#allocation3], 128
    $region25: #{tpu_custom_call.1} parent=1 // pred_fallthru
      _
    // Predicated region
    $region26: #{tpu_custom_call.1} parent=1 // pred_check
      _
    $region27: #{tpu_custom_call.1} parent=1 // pred_check_branch
      %57 = sbr.rel (0) target = $region29
    $region28: #{tpu_custom_call.1} parent=1 // pred_region
      %58 = dma.done [#allocation6], 1024
    $region29: #{tpu_custom_call.1} parent=1 // pred_fallthru
      _
    // Predicated region
    $region30: #{tpu_custom_call.1} parent=1 // pred_check
      _
    $region31: #{tpu_custom_call.1} parent=1 // pred_check_branch
      %60 = sbr.rel (0) target = $region33
    $region32: #{tpu_custom_call.1} parent=1 // pred_region
      %61 = dma.done [#allocation6], 1024
    $region33: #{tpu_custom_call.1} parent=1 // pred_fallthru
      _
    %p63 = scmp.eq.s32.totalorder 0, 0
    // Predicated region
    $region34: #{tpu_custom_call.1} parent=1 // pred_check
      %p64 = pneg %p63
    $region35: #{tpu_custom_call.1} parent=1 // pred_check_branch
      %66 = sbr.rel (%p64) target = $region37
    $region36: #{tpu_custom_call.1} parent=1 // pred_region
      %v67 = vld [vmem:[%s4] sm:$0x1]
      %v69 = vlaneseq
      %v70 = vshrl.u32 %v69, 7
      %v71 = vsub.s32 0, %v70
      %v72 = vrot.slane %v67, %v71
      %74 = vst [vmem:[#allocation8] sm:$0xff] %v72
      %75 = vst [vmem:[#allocation8 + $0x8] sm:$0xff] %v72
    $region37: #{tpu_custom_call.1} parent=1 // pred_fallthru
      _
    %v76 = vld [vmem:[#allocation2] sm:$0xf]
    %v77 = vld [vmem:[#allocation2 + $0x4] sm:$0xf]
    %v78 = vld [vmem:[#allocation5] sm:$0xf]
    %v79 = vld [vmem:[#allocation5 + $0x4] sm:$0xf]
    %v80 = vld [vmem:[#allocation5 + $0x8] sm:$0xf]
    %v81 = vld [vmem:[#allocation5 + $0xc] sm:$0xf]
    %v82 = vld [vmem:[#allocation5 + $0x10] sm:$0xf]
    %v83 = vld [vmem:[#allocation5 + $0x14] sm:$0xf]
    %v84 = vld [vmem:[#allocation5 + $0x18] sm:$0xf]
    %v85 = vld [vmem:[#allocation5 + $0x1c] sm:$0xf]
    %v86 = vld [vmem:[#allocation5 + $0x20] sm:$0xf]
    %v87 = vld [vmem:[#allocation5 + $0x24] sm:$0xf]
    %v88 = vld [vmem:[#allocation5 + $0x28] sm:$0xf]
    %v89 = vld [vmem:[#allocation5 + $0x2c] sm:$0xf]
    %v90 = vld [vmem:[#allocation5 + $0x30] sm:$0xf]
    %v91 = vld [vmem:[#allocation5 + $0x34] sm:$0xf]
    %v92 = vld [vmem:[#allocation5 + $0x38] sm:$0xf]
    %v93 = vld [vmem:[#allocation5 + $0x3c] sm:$0xf]
    %v94 = vld [vmem:[%s2] sm:$0x1]
    %v96 = vlaneseq
    %v97 = vshrl.u32 %v96, 7
    %v98 = vsub.s32 0, %v97
    %v99 = vrot.slane %v94, %v98
    %v103 = vunpack.c.l.b16 %v76
    %v104 = vunpack.c.l.b16 %v77
    %v105 = vpack.c.b16 %v104, %v103
    %v123 = vunpack.c.l.b16 %v78
    %v124 = vunpack.c.l.b16 %v79
    %v125 = vunpack.c.l.b16 %v80
    %v126 = vunpack.c.l.b16 %v81
    %v127 = vunpack.c.l.b16 %v82
    %v128 = vunpack.c.l.b16 %v83
    %v129 = vunpack.c.l.b16 %v84
    %v130 = vunpack.c.l.b16 %v85
    %v131 = vunpack.c.l.b16 %v86
    %v132 = vunpack.c.l.b16 %v87
    %v133 = vunpack.c.l.b16 %v88
    %v134 = vunpack.c.l.b16 %v89
    %v135 = vunpack.c.l.b16 %v90
    %v136 = vunpack.c.l.b16 %v91
    %v137 = vunpack.c.l.b16 %v92
    %v138 = vunpack.c.l.b16 %v93
    %v139 = vpack.c.b16 %v124, %v123
    %v140 = vpack.c.b16 %v126, %v125
    %v141 = vpack.c.b16 %v128, %v127
    %v142 = vpack.c.b16 %v130, %v129
    %v143 = vpack.c.b16 %v132, %v131
    %v144 = vpack.c.b16 %v134, %v133
    %v145 = vpack.c.b16 %v136, %v135
    %v146 = vpack.c.b16 %v138, %v137
    %155 = vmatprep.subr.bf16.mxu0 0
    %156 = vmatpush1.bf16.msra.mxu0 %v146
    %157 = vmatprep.subr.bf16.mxu0 0
    %158 = vmatpush1.bf16.msra.mxu0 %v145
    %159 = vmatprep.subr.bf16.mxu0 0
    %160 = vmatpush1.bf16.msra.mxu0 %v144
    %161 = vmatprep.subr.bf16.mxu0 0
    %162 = vmatpush1.bf16.msra.mxu0 %v143
    %163 = vmatprep.subr.bf16.mxu0 0
    %164 = vmatpush1.bf16.msra.mxu0 %v142
    %165 = vmatprep.subr.bf16.mxu0 0
    %166 = vmatpush1.bf16.msra.mxu0 %v141
    %167 = vmatprep.subr.bf16.mxu0 0
    %168 = vmatpush1.bf16.msra.mxu0 %v140
    %169 = vmatprep.subr.bf16.mxu0 0
    %170 = vmatpush1.bf16.msra.mxu0 %v139
    %171 = vmatprep.subr.bf16.mxu0 0
    %172 = vmatpush2.bf16.msra.mxu0 0
    %173 = vmatprep.subr.bf16.mxu0 0
    %174 = vmatpush2.bf16.msra.mxu0 0
    %175 = vmatprep.subr.bf16.mxu0 0
    %176 = vmatpush2.bf16.msra.mxu0 0
    %177 = vmatprep.subr.bf16.mxu0 0
    %178 = vmatpush2.bf16.msra.mxu0 0
    %179 = vmatprep.subr.bf16.mxu0 0
    %180 = vmatpush2.bf16.msra.mxu0 0
    %181 = vmatprep.subr.bf16.mxu0 0
    %182 = vmatpush2.bf16.msra.mxu0 0
    %183 = vmatprep.subr.bf16.mxu0 0
    %184 = vmatpush2.bf16.msra.mxu0 0
    %185 = vmatprep.subr.bf16.mxu0 0
    %186 = vmatpush2.bf16.msra.mxu0 0
    %187 = vmatprep.mubr.bf16.mxu0 0
    %188 = vmatmul.mubr.bf16.gmra.mxu0 %v105
    %v189 = vpop.f32.mrf.mxu0
    %v190 = vadd.f32 %v99, %v189
    %v191 = vpop.f32.mrf.mxu0
    %v192 = vpop.f32.mrf.mxu0
    %v193 = vadd.f32 %v99, %v192
    %v194 = vpop.f32.mrf.mxu0
    %195 = vdwg.mxu0
    %v196 = vmul.f32 %v190, 0.5
    %v197 = vmul.f32 %v193, 0.5
    %v198 = vmul.f32 %v190, 0.70710677
    %v199 = vmul.f32 %v193, 0.70710677
    %v200 = verf.f32.pop %v198
    %v201 = verf.f32.pop %v199
    %v202 = vadd.f32 %v200, 1.0
    %v203 = vadd.f32 %v201, 1.0
    %v204 = vmul.f32 %v196, %v202
    %v205 = vmul.f32 %v197, %v203
    %v206 = vld [vmem:[#allocation8] sm:$0xff]
    %v207 = vld [vmem:[#allocation8 + $0x8] sm:$0xff]
    %v208 = vpack.c.bf16 %v205, %v204
    %v209 = vld [vmem:[#allocation7] sm:$0xf]
    %v210 = vld [vmem:[#allocation7 + $0x4] sm:$0xf]
    %v211 = vld [vmem:[#allocation7 + $0x8] sm:$0xf]
    %v212 = vld [vmem:[#allocation7 + $0xc] sm:$0xf]
    %v213 = vld [vmem:[#allocation7 + $0x10] sm:$0xf]
    %v214 = vld [vmem:[#allocation7 + $0x14] sm:$0xf]
    %v215 = vld [vmem:[#allocation7 + $0x18] sm:$0xf]
    %v216 = vld [vmem:[#allocation7 + $0x1c] sm:$0xf]
    %v217 = vld [vmem:[#allocation7 + $0x20] sm:$0xf]
    %v218 = vld [vmem:[#allocation7 + $0x24] sm:$0xf]
    %v219 = vld [vmem:[#allocation7 + $0x28] sm:$0xf]
    %v220 = vld [vmem:[#allocation7 + $0x2c] sm:$0xf]
    %v221 = vld [vmem:[#allocation7 + $0x30] sm:$0xf]
    %v222 = vld [vmem:[#allocation7 + $0x34] sm:$0xf]
    %v223 = vld [vmem:[#allocation7 + $0x38] sm:$0xf]
    %v224 = vld [vmem:[#allocation7 + $0x3c] sm:$0xf]
    %v241 = vunpack.c.l.b16 %v209
    %v242 = vunpack.c.l.b16 %v210
    %v243 = vunpack.c.l.b16 %v211
    %v244 = vunpack.c.l.b16 %v212
    %v245 = vunpack.c.l.b16 %v213
    %v246 = vunpack.c.l.b16 %v214
    %v247 = vunpack.c.l.b16 %v215
    %v248 = vunpack.c.l.b16 %v216
    %v249 = vunpack.c.l.b16 %v217
    %v250 = vunpack.c.l.b16 %v218
    %v251 = vunpack.c.l.b16 %v219
    %v252 = vunpack.c.l.b16 %v220
    %v253 = vunpack.c.l.b16 %v221
    %v254 = vunpack.c.l.b16 %v222
    %v255 = vunpack.c.l.b16 %v223
    %v256 = vunpack.c.l.b16 %v224
    %v257 = vpack.c.b16 %v242, %v241
    %v258 = vpack.c.b16 %v244, %v243
    %v259 = vpack.c.b16 %v246, %v245
    %v260 = vpack.c.b16 %v248, %v247
    %v261 = vpack.c.b16 %v250, %v249
    %v262 = vpack.c.b16 %v252, %v251
    %v263 = vpack.c.b16 %v254, %v253
    %v264 = vpack.c.b16 %v256, %v255
    %273 = vmatprep.subr.bf16.mxu0 0
    %274 = vmatpush1.bf16.msra.mxu0 %v264
    %275 = vmatprep.subr.bf16.mxu0 0
    %276 = vmatpush1.bf16.msra.mxu0 %v263
    %277 = vmatprep.subr.bf16.mxu0 0
    %278 = vmatpush1.bf16.msra.mxu0 %v262
    %279 = vmatprep.subr.bf16.mxu0 0
    %280 = vmatpush1.bf16.msra.mxu0 %v261
    %281 = vmatprep.subr.bf16.mxu0 0
    %282 = vmatpush1.bf16.msra.mxu0 %v260
    %283 = vmatprep.subr.bf16.mxu0 0
    %284 = vmatpush1.bf16.msra.mxu0 %v259
    %285 = vmatprep.subr.bf16.mxu0 0
    %286 = vmatpush1.bf16.msra.mxu0 %v258
    %287 = vmatprep.subr.bf16.mxu0 0
    %288 = vmatpush1.bf16.msra.mxu0 %v257
    %289 = vmatprep.subr.bf16.mxu0 0
    %290 = vmatpush2.bf16.msra.mxu0 0
    %291 = vmatprep.subr.bf16.mxu0 0
    %292 = vmatpush2.bf16.msra.mxu0 0
    %293 = vmatprep.subr.bf16.mxu0 0
    %294 = vmatpush2.bf16.msra.mxu0 0
    %295 = vmatprep.subr.bf16.mxu0 0
    %296 = vmatpush2.bf16.msra.mxu0 0
    %297 = vmatprep.subr.bf16.mxu0 0
    %298 = vmatpush2.bf16.msra.mxu0 0
    %299 = vmatprep.subr.bf16.mxu0 0
    %300 = vmatpush2.bf16.msra.mxu0 0
    %301 = vmatprep.subr.bf16.mxu0 0
    %302 = vmatpush2.bf16.msra.mxu0 0
    %303 = vmatprep.subr.bf16.mxu0 0
    %304 = vmatpush2.bf16.msra.mxu0 0
    %305 = vmatprep.mubr.bf16.mxu0 0
    %306 = vmatmul.mubr.bf16.gmra.mxu0 %v208
    %v307 = vpop.f32.mrf.mxu0
    %v308 = vadd.f32 0.0, %v307
    %v309 = vpop.f32.mrf.mxu0
    %v310 = vpop.f32.mrf.mxu0
    %v311 = vadd.f32 0.0, %v310
    %v312 = vpop.f32.mrf.mxu0
    %313 = vdwg.mxu0
    %v314 = vadd.f32 %v206, %v308
    %v315 = vadd.f32 %v207, %v311
    %316 = vst [vmem:[#allocation8] sm:$0xff] %v314
    %317 = vst [vmem:[#allocation8 + $0x8] sm:$0xff] %v315
    // Predicated region
    $region38: #{tpu_custom_call.1} parent=1 // pred_check
      _
    $region39: #{tpu_custom_call.1} parent=1 // pred_check_branch
      %319 = sbr.rel (0) target = $region41
    $region40: #{tpu_custom_call.1} parent=1 // pred_region
      %s321 = ssub.s32 256, 256
      %322 = vsyncadd [#allocation4], %s321
      %s323 = sshll.u32 [#allocation8], 4
      %s324 = int_to_ptr.vmem [resolvable:$true] %s323
      %329 = dma.vmem_to_hbm [thread:$0]  %s324, 256, %s5, [#allocation4], 128, 128, 8
    $region41: #{tpu_custom_call.1} parent=1 // pred_fallthru
      _
    // Predicated region
    $region42: #{tpu_custom_call.1} parent=1 // pred_check
      _
    $region43: #{tpu_custom_call.1} parent=1 // pred_check_branch
      %331 = sbr.rel (0) target = $region45
    $region44: #{tpu_custom_call.1} parent=1 // pred_region
      %332 = dma.done [#allocation4], 256
    $region45: #{tpu_custom_call.1} parent=1 // pred_fallthru
      _
    %333 = vsyncpa [#allocation3], 1
    %334 = vsyncpa [#allocation6], 1
    %335 = vsyncpa [#allocation4], 1

// kernel: tpu_custom_call.1
$region0: #{tpu_custom_call.1}
  #allocation0 [shape = 'u32[]', space=smem, size = 0x4, offset = 0x4, fixed_abs, tag = 'smem constant byte address 0x4 - core index']
  #allocation1 [shape = 'u32[144,128]{1,0:T(1,128)}', space=vmem, size = 0x12000, scoped, tag = 'internal scratch']
  %s0 = inlined_call_operand.hbm [shape: bf16[16,128], index: 0, kind: input, shape index: {}]
  %s1 = inlined_call_operand.hbm [shape: bf16[128,128], index: 1, kind: input, shape index: {}]
  %s2 = inlined_call_operand.vmem [shape: f32[1,128], index: 2, kind: input, shape index: {}]
  %s3 = inlined_call_operand.hbm [shape: bf16[128,128], index: 3, kind: input, shape index: {}]
  %s4 = inlined_call_operand.vmem [shape: f32[1,128], index: 4, kind: input, shape index: {}]
  %s5 = inlined_call_operand.hbm [shape: f32[16,128], index: 5, kind: output, shape index: {}]
  %s6 = sld [smem:[#allocation0]]
  $region46: #{tpu_custom_call.1} parent=0
    _
  %s8 = ssub.s32 1, %s6
  %s9 = scalar_select 0, %s8, %s6
  $region1: #{tpu_custom_call.1} parent=0
    #allocation2 [shape = 'u8[4096]{0}', space=vmem, size = 0x1000, scoped, tag = 'input window, operand 0, single buffered']
    #allocation3 [shape = 's32[1]{0}', space=sflag, size = 0x4, scoped, tag = 'scoped memory for tpu_custom_call.1']
    #allocation4 [shape = 's32[1]{0}', space=sflag, size = 0x4, scoped, tag = 'scoped memory for tpu_custom_call.1']
    #allocation5 [shape = 'u8[32768]{0}', space=vmem, size = 0x8000, scoped, tag = 'input window, operand 1, single buffered']
    #allocation6 [shape = 's32[1]{0}', space=sflag, size = 0x4, scoped, tag = 'scoped memory for tpu_custom_call.1']
    #allocation7 [shape = 'u8[32768]{0}', space=vmem, size = 0x8000, scoped, tag = 'input window, operand 3, single buffered']
    #allocation8 [shape = 'u8[8192]{0}', space=vmem, size = 0x2000, scoped, tag = 'output window, operand 0, single buffered']
    %10 = vsyncpa [#allocation3], 0
    %11 = vsyncpa [#allocation6], 0
    %12 = vsyncpa [#allocation4], 0
    // Predicated region
    $region2: #{tpu_custom_call.1} parent=1 // pred_check
      _
    $region3: #{tpu_custom_call.1} parent=1 // pred_check_branch
      %14 = sbr.rel (0) target = $region5
    $region4: #{tpu_custom_call.1} parent=1 // pred_region
      %s16 = ssub.s32 128, 128
      %17 = vsyncadd [#allocation3], %s16
      %s18 = sshll.u32 [#allocation2], 4
      %s19 = int_to_ptr.vmem [resolvable:$true] %s18
      %24 = dma.hbm_to_vmem [thread:$0]  %s0, 128, %s19, [#allocation3], 64, 64, 4
    $region5: #{tpu_custom_call.1} parent=1 // pred_fallthru
      _
    // Predicated region
    $region6: #{tpu_custom_call.1} parent=1 // pred_check
      _
    $region7: #{tpu_custom_call.1} parent=1 // pred_check_branch
      %26 = sbr.rel (0) target = $region9
    $region8: #{tpu_custom_call.1} parent=1 // pred_region
      %s28 = ssub.s32 1024, 1024
      %29 = vsyncadd [#allocation6], %s28
      %s30 = sshll.u32 [#allocation5], 4
      %s31 = int_to_ptr.vmem [resolvable:$true] %s30
      %36 = dma.hbm_to_vmem [thread:$0]  %s1, 1024, %s31, [#allocation6], 64, 64, 4
    $region9: #{tpu_custom_call.1} parent=1 // pred_fallthru
      _
    // Predicated region
    $region10: #{tpu_custom_call.1} parent=1 // pred_check
      _
    $region11: #{tpu_custom_call.1} parent=1 // pred_check_branch
      %38 = sbr.rel (0) target = $region13
    $region12: #{tpu_custom_call.1} parent=1 // pred_region
      _
    $region13: #{tpu_custom_call.1} parent=1 // pred_fallthru
      _
    // Predicated region
    $region14: #{tpu_custom_call.1} parent=1 // pred_check
      _
    $region15: #{tpu_custom_call.1} parent=1 // pred_check_branch
      %40 = sbr.rel (0) target = $region17
    $region16: #{tpu_custom_call.1} parent=1 // pred_region
      %s42 = ssub.s32 1024, 1024
      %43 = vsyncadd [#allocation6], %s42
      %s44 = sshll.u32 [#allocation7], 4
      %s45 = int_to_ptr.vmem [resolvable:$true] %s44
      %50 = dma.hbm_to_vmem [thread:$0]  %s3, 1024, %s45, [#allocation6], 64, 64, 4
    $region17: #{tpu_custom_call.1} parent=1 // pred_fallthru
      _
    // Predicated region
    $region18: #{tpu_custom_call.1} parent=1 // pred_check
      _
    $region19: #{tpu_custom_call.1} parent=1 // pred_check_branch
      %52 = sbr.rel (0) target = $region21
    $region20: #{tpu_custom_call.1} parent=1 // pred_region
      _
    $region21: #{tpu_custom_call.1} parent=1 // pred_fallthru
      _
    // Predicated region
    $region22: #{tpu_custom_call.1} parent=1 // pred_check
      _
    $region23: #{tpu_custom_call.1} parent=1 // pred_check_branch
      %54 = sbr.rel (0) target = $region25
    $region24: #{tpu_custom_call.1} parent=1 // pred_region
      %55 = dma.done [#allocation3], 128
    $region25: #{tpu_custom_call.1} parent=1 // pred_fallthru
      _
    // Predicated region
    $region26: #{tpu_custom_call.1} parent=1 // pred_check
      _
    $region27: #{tpu_custom_call.1} parent=1 // pred_check_branch
      %57 = sbr.rel (0) target = $region29
    $region28: #{tpu_custom_call.1} parent=1 // pred_region
      %58 = dma.done [#allocation6], 1024
    $region29: #{tpu_custom_call.1} parent=1 // pred_fallthru
      _
    // Predicated region
    $region30: #{tpu_custom_call.1} parent=1 // pred_check
      _
    $region31: #{tpu_custom_call.1} parent=1 // pred_check_branch
      %60 = sbr.rel (0) target = $region33
    $region32: #{tpu_custom_call.1} parent=1 // pred_region
      %61 = dma.done [#allocation6], 1024
    $region33: #{tpu_custom_call.1} parent=1 // pred_fallthru
      _
    %p63 = scmp.eq.s32.totalorder 0, 0
    // Predicated region
    $region34: #{tpu_custom_call.1} parent=1 // pred_check
      %p64 = pneg %p63
    $region35: #{tpu_custom_call.1} parent=1 // pred_check_branch
      %66 = sbr.rel (%p64) target = $region37
    $region36: #{tpu_custom_call.1} parent=1 // pred_region
      %v67 = vld [vmem:[%s4] sm:$0x1]
      %v69 = vlaneseq
      %v70 = vshrl.u32 %v69, 7
      %v71 = vsub.s32 0, %v70
      %v72 = vrot.slane %v67, %v71
      %74 = vst [vmem:[#allocation8] sm:$0xff] %v72
      %75 = vst [vmem:[#allocation8 + $0x8] sm:$0xff] %v72
    $region37: #{tpu_custom_call.1} parent=1 // pred_fallthru
      _
    %v76 = vld [vmem:[#allocation2] sm:$0xf]
    %v77 = vld [vmem:[#allocation2 + $0x4] sm:$0xf]
    %v78 = vld [vmem:[#allocation5] sm:$0xf]
    %v79 = vld [vmem:[#allocation5 + $0x4] sm:$0xf]
    %v80 = vld [vmem:[#allocation5 + $0x8] sm:$0xf]
    %v81 = vld [vmem:[#allocation5 + $0xc] sm:$0xf]
    %v82 = vld [vmem:[#allocation5 + $0x10] sm:$0xf]
    %v83 = vld [vmem:[#allocation5 + $0x14] sm:$0xf]
    %v84 = vld [vmem:[#allocation5 + $0x18] sm:$0xf]
    %v85 = vld [vmem:[#allocation5 + $0x1c] sm:$0xf]
    %v86 = vld [vmem:[#allocation5 + $0x20] sm:$0xf]
    %v87 = vld [vmem:[#allocation5 + $0x24] sm:$0xf]
    %v88 = vld [vmem:[#allocation5 + $0x28] sm:$0xf]
    %v89 = vld [vmem:[#allocation5 + $0x2c] sm:$0xf]
    %v90 = vld [vmem:[#allocation5 + $0x30] sm:$0xf]
    %v91 = vld [vmem:[#allocation5 + $0x34] sm:$0xf]
    %v92 = vld [vmem:[#allocation5 + $0x38] sm:$0xf]
    %v93 = vld [vmem:[#allocation5 + $0x3c] sm:$0xf]
    %v94 = vld [vmem:[%s2] sm:$0x1]
    %v96 = vlaneseq
    %v97 = vshrl.u32 %v96, 7
    %v98 = vsub.s32 0, %v97
    %v99 = vrot.slane %v94, %v98
    %v103 = vunpack.c.l.b16 %v76
    %v104 = vunpack.c.l.b16 %v77
    %v105 = vpack.c.b16 %v104, %v103
    %v123 = vunpack.c.l.b16 %v78
    %v124 = vunpack.c.l.b16 %v79
    %v125 = vunpack.c.l.b16 %v80
    %v126 = vunpack.c.l.b16 %v81
    %v127 = vunpack.c.l.b16 %v82
    %v128 = vunpack.c.l.b16 %v83
    %v129 = vunpack.c.l.b16 %v84
    %v130 = vunpack.c.l.b16 %v85
    %v131 = vunpack.c.l.b16 %v86
    %v132 = vunpack.c.l.b16 %v87
    %v133 = vunpack.c.l.b16 %v88
    %v134 = vunpack.c.l.b16 %v89
    %v135 = vunpack.c.l.b16 %v90
    %v136 = vunpack.c.l.b16 %v91
    %v137 = vunpack.c.l.b16 %v92
    %v138 = vunpack.c.l.b16 %v93
    %v139 = vpack.c.b16 %v124, %v123
    %v140 = vpack.c.b16 %v126, %v125
    %v141 = vpack.c.b16 %v128, %v127
    %v142 = vpack.c.b16 %v130, %v129
    %v143 = vpack.c.b16 %v132, %v131
    %v144 = vpack.c.b16 %v134, %v133
    %v145 = vpack.c.b16 %v136, %v135
    %v146 = vpack.c.b16 %v138, %v137
    %155 = vmatprep.subr.bf16.mxu0 0
    %156 = vmatpush1.bf16.msra.mxu0 %v146
    %157 = vmatprep.subr.bf16.mxu0 0
    %158 = vmatpush1.bf16.msra.mxu0 %v145
    %159 = vmatprep.subr.bf16.mxu0 0
    %160 = vmatpush1.bf16.msra.mxu0 %v144
    %161 = vmatprep.subr.bf16.mxu0 0
    %162 = vmatpush1.bf16.msra.mxu0 %v143
    %163 = vmatprep.subr.bf16.mxu0 0
    %164 = vmatpush1.bf16.msra.mxu0 %v142
    %165 = vmatprep.subr.bf16.mxu0 0
    %166 = vmatpush1.bf16.msra.mxu0 %v141
    %167 = vmatprep.subr.bf16.mxu0 0
    %168 = vmatpush1.bf16.msra.mxu0 %v140
    %169 = vmatprep.subr.bf16.mxu0 0
    %170 = vmatpush1.bf16.msra.mxu0 %v139
    %171 = vmatprep.subr.bf16.mxu0 0
    %172 = vmatpush2.bf16.msra.mxu0 0
    %173 = vmatprep.subr.bf16.mxu0 0
    %174 = vmatpush2.bf16.msra.mxu0 0
    %175 = vmatprep.subr.bf16.mxu0 0
    %176 = vmatpush2.bf16.msra.mxu0 0
    %177 = vmatprep.subr.bf16.mxu0 0
    %178 = vmatpush2.bf16.msra.mxu0 0
    %179 = vmatprep.subr.bf16.mxu0 0
    %180 = vmatpush2.bf16.msra.mxu0 0
    %181 = vmatprep.subr.bf16.mxu0 0
    %182 = vmatpush2.bf16.msra.mxu0 0
    %183 = vmatprep.subr.bf16.mxu0 0
    %184 = vmatpush2.bf16.msra.mxu0 0
    %185 = vmatprep.subr.bf16.mxu0 0
    %186 = vmatpush2.bf16.msra.mxu0 0
    %187 = vmatprep.mubr.bf16.mxu0 0
    %188 = vmatmul.mubr.bf16.gmra.mxu0 %v105
    %v189 = vpop.f32.mrf.mxu0
    %v190 = vadd.f32 %v99, %v189
    %v191 = vpop.f32.mrf.mxu0
    %v192 = vpop.f32.mrf.mxu0
    %v193 = vadd.f32 %v99, %v192
    %v194 = vpop.f32.mrf.mxu0
    %195 = vdwg.mxu0
    %v196 = vmul.f32 %v190, 0.5
    %v197 = vmul.f32 %v193, 0.5
    %v198 = vmul.f32 %v190, 0.70710677
    %v199 = vmul.f32 %v193, 0.70710677
    %v200 = verf.f32.pop %v198
    %v201 = verf.f32.pop %v199
    %v202 = vadd.f32 %v200, 1.0
    %v203 = vadd.f32 %v201, 1.0
    %v204 = vmul.f32 %v196, %v202
    %v205 = vmul.f32 %v197, %v203
    %v206 = vld [vmem:[#allocation8] sm:$0xff]
    %v207 = vld [vmem:[#allocation8 + $0x8] sm:$0xff]
    %v208 = vpack.c.bf16 %v205, %v204
    %v209 = vld [vmem:[#allocation7] sm:$0xf]
    %v210 = vld [vmem:[#allocation7 + $0x4] sm:$0xf]
    %v211 = vld [vmem:[#allocation7 + $0x8] sm:$0xf]
    %v212 = vld [vmem:[#allocation7 + $0xc] sm:$0xf]
    %v213 = vld [vmem:[#allocation7 + $0x10] sm:$0xf]
    %v214 = vld [vmem:[#allocation7 + $0x14] sm:$0xf]
    %v215 = vld [vmem:[#allocation7 + $0x18] sm:$0xf]
    %v216 = vld [vmem:[#allocation7 + $0x1c] sm:$0xf]
    %v217 = vld [vmem:[#allocation7 + $0x20] sm:$0xf]
    %v218 = vld [vmem:[#allocation7 + $0x24] sm:$0xf]
    %v219 = vld [vmem:[#allocation7 + $0x28] sm:$0xf]
    %v220 = vld [vmem:[#allocation7 + $0x2c] sm:$0xf]
    %v221 = vld [vmem:[#allocation7 + $0x30] sm:$0xf]
    %v222 = vld [vmem:[#allocation7 + $0x34] sm:$0xf]
    %v223 = vld [vmem:[#allocation7 + $0x38] sm:$0xf]
    %v224 = vld [vmem:[#allocation7 + $0x3c] sm:$0xf]
    %v241 = vunpack.c.l.b16 %v209
    %v242 = vunpack.c.l.b16 %v210
    %v243 = vunpack.c.l.b16 %v211
    %v244 = vunpack.c.l.b16 %v212
    %v245 = vunpack.c.l.b16 %v213
    %v246 = vunpack.c.l.b16 %v214
    %v247 = vunpack.c.l.b16 %v215
    %v248 = vunpack.c.l.b16 %v216
    %v249 = vunpack.c.l.b16 %v217
    %v250 = vunpack.c.l.b16 %v218
    %v251 = vunpack.c.l.b16 %v219
    %v252 = vunpack.c.l.b16 %v220
    %v253 = vunpack.c.l.b16 %v221
    %v254 = vunpack.c.l.b16 %v222
    %v255 = vunpack.c.l.b16 %v223
    %v256 = vunpack.c.l.b16 %v224
    %v257 = vpack.c.b16 %v242, %v241
    %v258 = vpack.c.b16 %v244, %v243
    %v259 = vpack.c.b16 %v246, %v245
    %v260 = vpack.c.b16 %v248, %v247
    %v261 = vpack.c.b16 %v250, %v249
    %v262 = vpack.c.b16 %v252, %v251
    %v263 = vpack.c.b16 %v254, %v253
    %v264 = vpack.c.b16 %v256, %v255
    %273 = vmatprep.subr.bf16.mxu0 0
    %274 = vmatpush1.bf16.msra.mxu0 %v264
    %275 = vmatprep.subr.bf16.mxu0 0
    %276 = vmatpush1.bf16.msra.mxu0 %v263
    %277 = vmatprep.subr.bf16.mxu0 0
    %278 = vmatpush1.bf16.msra.mxu0 %v262
    %279 = vmatprep.subr.bf16.mxu0 0
    %280 = vmatpush1.bf16.msra.mxu0 %v261
    %281 = vmatprep.subr.bf16.mxu0 0
    %282 = vmatpush1.bf16.msra.mxu0 %v260
    %283 = vmatprep.subr.bf16.mxu0 0
    %284 = vmatpush1.bf16.msra.mxu0 %v259
    %285 = vmatprep.subr.bf16.mxu0 0
    %286 = vmatpush1.bf16.msra.mxu0 %v258
    %287 = vmatprep.subr.bf16.mxu0 0
    %288 = vmatpush1.bf16.msra.mxu0 %v257
    %289 = vmatprep.subr.bf16.mxu0 0
    %290 = vmatpush2.bf16.msra.mxu0 0
    %291 = vmatprep.subr.bf16.mxu0 0
    %292 = vmatpush2.bf16.msra.mxu0 0
    %293 = vmatprep.subr.bf16.mxu0 0
    %294 = vmatpush2.bf16.msra.mxu0 0
    %295 = vmatprep.subr.bf16.mxu0 0
    %296 = vmatpush2.bf16.msra.mxu0 0
    %297 = vmatprep.subr.bf16.mxu0 0
    %298 = vmatpush2.bf16.msra.mxu0 0
    %299 = vmatprep.subr.bf16.mxu0 0
    %300 = vmatpush2.bf16.msra.mxu0 0
    %301 = vmatprep.subr.bf16.mxu0 0
    %302 = vmatpush2.bf16.msra.mxu0 0
    %303 = vmatprep.subr.bf16.mxu0 0
    %304 = vmatpush2.bf16.msra.mxu0 0
    %305 = vmatprep.mubr.bf16.mxu0 0
    %306 = vmatmul.mubr.bf16.gmra.mxu0 %v208
    %v307 = vpop.f32.mrf.mxu0
    %v308 = vadd.f32 0.0, %v307
    %v309 = vpop.f32.mrf.mxu0
    %v310 = vpop.f32.mrf.mxu0
    %v311 = vadd.f32 0.0, %v310
    %v312 = vpop.f32.mrf.mxu0
    %313 = vdwg.mxu0
    %v314 = vadd.f32 %v206, %v308
    %v315 = vadd.f32 %v207, %v311
    %316 = vst [vmem:[#allocation8] sm:$0xff] %v314
    %317 = vst [vmem:[#allocation8 + $0x8] sm:$0xff] %v315
    // Predicated region
    $region38: #{tpu_custom_call.1} parent=1 // pred_check
      _
    $region39: #{tpu_custom_call.1} parent=1 // pred_check_branch
      %319 = sbr.rel (0) target = $region41
    $region40: #{tpu_custom_call.1} parent=1 // pred_region
      %s321 = ssub.s32 256, 256
      %322 = vsyncadd [#allocation4], %s321
      %s323 = sshll.u32 [#allocation8], 4
      %s324 = int_to_ptr.vmem [resolvable:$true] %s323
      %329 = dma.vmem_to_hbm [thread:$0]  %s324, 256, %s5, [#allocation4], 128, 128, 8
    $region41: #{tpu_custom_call.1} parent=1 // pred_fallthru
      _
    // Predicated region
    $region42: #{tpu_custom_call.1} parent=1 // pred_check
      _
    $region43: #{tpu_custom_call.1} parent=1 // pred_check_branch
      %331 = sbr.rel (0) target = $region45
    $region44: #{tpu_custom_call.1} parent=1 // pred_region
      %332 = dma.done [#allocation4], 256
    $region45: #{tpu_custom_call.1} parent=1 // pred_fallthru
      _
    %333 = vsyncpa [#allocation3], 1
    %334 = vsyncpa [#allocation6], 1
    %335 = vsyncpa [#allocation4], 1

</llo_original>
